<compile_context>
chip_gen: v7x
topology: tpu7x:2x2x1
jax: 0.10.0
libtpu: 0.0.40
codegen_flags: <defaults>
</compile_context>

<pallas_src>
import math
from functools import partial

import jax
import jax.numpy as jnp
from jax.experimental import pallas as pl
from jax.experimental.pallas import tpu as pltpu

LN_EPS = 1e-5  # torch.nn.LayerNorm default


def _cdiv(a, b):
    return -(-a // b)


def _round_up(a, b):
    return (a + b - 1) // b * b


def _tpu_vmem_capacity():
    """Physical VMEM bytes per core; conservative fallback if the query fails."""
    try:
        info = pltpu.get_tpu_info()
        cap = getattr(info, "vmem_capacity_bytes", None)
        if cap:
            return int(cap)
    except Exception:
        pass
    return 64 * 1024 * 1024  # v7x-sized fallback (most conservative generation)


def _layernorm_rows(x, f_real):
    """Row-wise LayerNorm (no affine, biased variance, eps=1e-5) over the last axis.

    The block's lane dim equals the true feature count, so no column masking is needed.
    """
    inv_f = 1.0 / float(f_real)
    mean = jnp.sum(x, axis=-1, keepdims=True) * inv_f
    xc = x - mean
    var = jnp.sum(xc * xc, axis=-1, keepdims=True) * inv_f
    return xc * jax.lax.rsqrt(var + LN_EPS)


def _mask_pad_rows(normed, start_row, b_real):
    """Zero rows whose global batch index is >= b_real (ragged last tile)."""
    row = jax.lax.broadcasted_iota(jnp.int32, normed.shape, 0)
    return jnp.where(row + start_row < b_real, normed, 0.0)


# ---------------------------------------------------------------------------
# Fused single-call kernel: phase 0 = LayerNorm + phi accumulation into VMEM,
# phase 1 = gate against phi. x is read from HBM exactly once.
# ---------------------------------------------------------------------------
def _fused_kernel(x_ref, out_ref, phi_ref, norm_ref, *,
                  b_real, tile_b, f_real, n_b, ragged_b):
    p = pl.program_id(0)   # phase: 0 = normalize/accumulate, 1 = gate
    i = pl.program_id(1)   # batch-tile index

    @pl.when(p == 0)
    def _phase_norm():
        normed = _layernorm_rows(x_ref[...].astype(jnp.float32), f_real)
        if ragged_b:  # static: only taken when B % tile_b != 0
            normed = _mask_pad_rows(normed, i * tile_b, b_real)
        norm_ref[i] = normed

        @pl.when(i == 0)
        def _init():
            phi_ref[...] = jnp.zeros_like(phi_ref)

        phi_ref[...] += jnp.sum(normed, axis=0, keepdims=True)

        @pl.when(i == n_b - 1)
        def _finalize():
            phi_ref[...] *= 1.0 / float(b_real)

    @pl.when(p == 1)
    def _phase_gate():
        normed = norm_ref[i]
        out_ref[...] = jnp.where(normed >= phi_ref[...], normed, 0.0).astype(out_ref.dtype)


# ---------------------------------------------------------------------------
# Fallback pass 1: per-split partial sums of LayerNorm(x) over the batch.
# Grid = (n_split, n_b_inner); the split axis is "parallel" so v7x megacore can
# stream x on both TensorCores. Combine (+ /B) is a tiny wrapper reduce.
# ---------------------------------------------------------------------------
def _phi_partial_kernel(x_ref, phi_ref, *, b_real, tile_b, f_real, n_b_inner, ragged_b):
    c = pl.program_id(0)
    i = pl.program_id(1)

    @pl.when(i == 0)
    def _init():
        phi_ref[...] = jnp.zeros_like(phi_ref)

    normed = _layernorm_rows(x_ref[...].astype(jnp.float32), f_real)
    if ragged_b:
        normed = _mask_pad_rows(normed, (c * n_b_inner + i) * tile_b, b_real)
    phi_ref[...] += jnp.sum(normed, axis=0, keepdims=True)[None]


# ---------------------------------------------------------------------------
# Fallback pass 2: recompute LayerNorm per row tile and gate against phi.
# ---------------------------------------------------------------------------
def _gate_kernel(x_ref, phi_ref, out_ref, *, f_real):
    normed = _layernorm_rows(x_ref[...].astype(jnp.float32), f_real)
    out_ref[...] = jnp.where(normed >= phi_ref[...], normed, 0.0).astype(out_ref.dtype)


def xda_forward(x, *, max_block_bytes=None, vmem_limit_bytes=None, use_fused=None):
    """XdA first-call forward. Returns (out, phi): out.shape == x.shape,
    phi.shape == x.shape[1:] (the value _check_init writes into phi[t]/mu[t])."""
    B = x.shape[0]
    feat_shape = x.shape[1:]
    F = math.prod(feat_shape)
    x2 = x.reshape(B, F)                       # contiguous -> free reshape; no dtype copy
    out_dtype = x2.dtype
    in_itemsize = x2.dtype.itemsize
    out_itemsize = jnp.dtype(out_dtype).itemsize

    # Generation-aware budgets: v5e/v6e (128 MiB physical) -> 64 MiB limit / 16 MiB blocks;
    # v7x (64 MiB physical) -> 32 MiB limit / 8 MiB blocks.
    vmem_cap = _tpu_vmem_capacity()
    if vmem_limit_bytes is None:
        vmem_limit_bytes = vmem_cap // 2
    if max_block_bytes is None:
        max_block_bytes = vmem_cap // 8

    F_lane = _round_up(F, 128)                         # physical lane footprint (accounting only)
    sub = max(8, 32 // max(1, in_itemsize))            # packed-sublane alignment: 8 f32 / 16 bf16 / 32 int8

    def pick_tile(bytes_per_row):
        t = max(1, max_block_bytes // bytes_per_row)
        if t >= B:
            return B                                   # full-dim block is always legal
        return max(sub, (t // sub) * sub)              # sublane/pack-aligned tile

    # ------------------------- fused fast path -------------------------
    tile_b_f = pick_tile(F_lane * in_itemsize)         # phase-0 tiles sized from input only
    n_b_f = _cdiv(B, tile_b_f)
    scratch_rows = n_b_f * _round_up(tile_b_f, 8)
    fused_bytes = (scratch_rows * F_lane * 4                                    # resident f32 LN scratch
                   + 2 * _round_up(tile_b_f, sub) * F_lane * (in_itemsize + out_itemsize)
                   + 4 * F_lane * 4)                                            # phi block + slack
    fused_ok = fused_bytes <= int(vmem_limit_bytes * 0.85)
    if use_fused is not None:
        fused_ok = bool(use_fused) and fused_ok

    if fused_ok:
        ragged = (B % tile_b_f) != 0
        cost = pl.CostEstimate(
            flops=int(10 * B * F),
            transcendentals=int(B),
            bytes_accessed=int(B * F * (in_itemsize + out_itemsize) + F * 4))
        out2, phi2 = pl.pallas_call(
            partial(_fused_kernel, b_real=B, tile_b=tile_b_f, f_real=F,
                    n_b=n_b_f, ragged_b=ragged),
            out_shape=(jax.ShapeDtypeStruct((B, F), out_dtype),
                       jax.ShapeDtypeStruct((1, F), jnp.float32)),
            grid=(2, n_b_f),
            in_specs=[
                # phase 0 walks the batch tiles; phase 1 pins the index to the last
                # fetched tile so x is never re-DMA'd.
                pl.BlockSpec((tile_b_f, F),
                             lambda p, i, _n=n_b_f: ((1 - p) * i + p * (_n - 1), 0)),
            ],
            out_specs=(
                # phase 0 parks on block 0 (never written -> never flushed); phase 1
                # writes each block exactly once.
                pl.BlockSpec((tile_b_f, F), lambda p, i: (p * i, 0)),
                pl.BlockSpec((1, F), lambda p, i: (0, 0)),      # resident phi accumulator
            ),
            scratch_shapes=[pltpu.VMEM((n_b_f, tile_b_f, F), jnp.float32)],
            compiler_params=pltpu.CompilerParams(
                dimension_semantics=("arbitrary", "arbitrary"),
                vmem_limit_bytes=int(vmem_limit_bytes)),
            cost_estimate=cost,
        )(x2)
        return out2.reshape(x.shape), phi2.reshape(feat_shape)

    # --------------------- two-pass large-array path -------------------
    # Guard: the smallest legal pass-2 block (sub rows x full F, double-buffered)
    # must fit the scoped limit; bump it (within physical VMEM) if not.
    min_needed = 2 * sub * F_lane * (in_itemsize + out_itemsize) + 8 * F_lane * 4
    if min_needed > vmem_limit_bytes:
        vmem_limit_bytes = min(int(min_needed * 1.25), int(vmem_cap * 0.9))
    # TODO(synk): for F so large that even a sub-row block busts VMEM, emit per-row
    # (mean, rstd) stats from pass 1 and lane-tile pass 2 instead of whole-F blocks.

    # Pass 1: partial phi sums, input-only tile budget (taller tiles, fewer grid steps).
    tile_b1 = pick_tile(F_lane * in_itemsize)
    n_b1 = _cdiv(B, tile_b1)
    n_split = 2 if (n_b1 >= 2 and n_b1 % 2 == 0) else 1   # even split -> v7x megacore shardable
    n_b_inner = n_b1 // n_split
    ragged1 = (B % tile_b1) != 0

    cost1 = pl.CostEstimate(flops=int(6 * B * F), transcendentals=int(B),
                            bytes_accessed=int(B * F * in_itemsize + n_split * F * 4))
    phi_parts = pl.pallas_call(
        partial(_phi_partial_kernel, b_real=B, tile_b=tile_b1, f_real=F,
                n_b_inner=n_b_inner, ragged_b=ragged1),
        out_shape=jax.ShapeDtypeStruct((n_split, 1, F), jnp.float32),
        grid=(n_split, n_b_inner),
        in_specs=[pl.BlockSpec((tile_b1, F),
                               lambda c, i, _nbi=n_b_inner: (c * _nbi + i, 0))],
        out_specs=pl.BlockSpec((1, 1, F), lambda c, i: (c, 0, 0)),
        compiler_params=pltpu.CompilerParams(
            dimension_semantics=("parallel", "arbitrary"),
            vmem_limit_bytes=int(vmem_limit_bytes)),
        cost_estimate=cost1,
    )(x2)
    phi2 = jnp.sum(phi_parts, axis=0) * (1.0 / float(B))   # tiny (1, F) combine

    # Pass 2: gate; ensure >= 2 tiles so the "parallel" axis can use both v7x cores.
    tile_b2 = pick_tile(F_lane * (in_itemsize + out_itemsize))
    if tile_b2 >= B and B >= 2 * sub:
        tile_b2 = _round_up(_cdiv(B, 2), sub)
    n_b2 = _cdiv(B, tile_b2)

    cost2 = pl.CostEstimate(flops=int(8 * B * F), transcendentals=int(B),
                            bytes_accessed=int(B * F * (in_itemsize + out_itemsize) + F * 4))
    out2 = pl.pallas_call(
        partial(_gate_kernel, f_real=F),
        out_shape=jax.ShapeDtypeStruct((B, F), out_dtype),
        grid=(n_b2,),
        in_specs=[pl.BlockSpec((tile_b2, F), lambda i: (i, 0)),
                  pl.BlockSpec((1, F), lambda i: (0, 0))],
        out_specs=pl.BlockSpec((tile_b2, F), lambda i: (i, 0)),
        compiler_params=pltpu.CompilerParams(
            dimension_semantics=("parallel",),
            vmem_limit_bytes=int(vmem_limit_bytes)),
        cost_estimate=cost2,
    )(x2, phi2)

    return out2.reshape(x.shape), phi2.reshape(feat_shape)


def xda_reference(x):
    """Pure-JAX reference for sanity checking."""
    B = x.shape[0]
    x2 = x.reshape(B, -1).astype(jnp.float32)
    mean = jnp.mean(x2, axis=-1, keepdims=True)
    var = jnp.mean((x2 - mean) ** 2, axis=-1, keepdims=True)
    y = (x2 - mean) / jnp.sqrt(var + LN_EPS)
    phi = jnp.mean(y, axis=0, keepdims=True)
    out = y * (y >= phi).astype(jnp.float32)
    return out.reshape(x.shape).astype(x.dtype), phi[0].reshape(x.shape[1:])


if __name__ == "__main__":
    # Module state per __init__: phi[t] = zeros(shape[1:]) (deterministic); it is
    # overwritten by _check_init on the first forward, so it never enters the math.
    ok = True

    # Primary shape consistent with the module: NCHW activations, batch=2 (fused path,
    # single tile).
    x = jax.random.normal(jax.random.PRNGKey(0), (2, 4, 16, 16), dtype=jnp.float32)
    out, phi = xda_forward(x)
    jax.block_until_ready((out, phi))
    out_r, phi_r = xda_reference(x)
    ok = ok and bool(jnp.allclose(out, out_r, atol=1e-5, rtol=1e-5))
    ok = ok and bool(jnp.allclose(phi, phi_r, atol=1e-5, rtol=1e-5))

    # Fused path with batch tiling, ragged last tile, and a non-multiple-of-128 feature
    # dim (B=20 -> 16-row tiles, F=3*7*9=189 full-F blocks).
    x_b = jax.random.normal(jax.random.PRNGKey(0), (20, 3, 7, 9), dtype=jnp.float32)
    out_b, phi_b = xda_forward(x_b, max_block_bytes=16 * 1024)
    jax.block_until_ready((out_b, phi_b))
    out_br, phi_br = xda_reference(x_b)
    ok = ok and bool(jnp.allclose(out_b, out_br, atol=1e-5, rtol=1e-5))
    ok = ok and bool(jnp.allclose(phi_b, phi_br, atol=1e-5, rtol=1e-5))

    # Forced two-pass fallback (large-array) path: split phi partials + tiled gate pass.
    out_c, phi_c = xda_forward(x_b, max_block_bytes=16 * 1024, use_fused=False)
    jax.block_until_ready((out_c, phi_c))
    ok = ok and bool(jnp.allclose(out_c, out_br, atol=1e-5, rtol=1e-5))
    ok = ok and bool(jnp.allclose(phi_c, phi_br, atol=1e-5, rtol=1e-5))

    if not ok:
        raise AssertionError("Pallas XdA kernel does not match reference")

    # TODO(synk): the Python-side stateful bookkeeping (self.init flags, training-time
    # mu EMA, reg()) is module state, not forward compute; intentionally not in-kernel.
    print("KERNEL_OK")
</pallas_src>

<mosaic_0001>
module attributes {stable_mosaic.version = 11 : i64} {
  func.func @_fused_kernel(%arg0: i32, %arg1: i32, %arg2: memref<2x1024xf32, #tpu.memory_space<vmem>>, %arg3: memref<2x1024xf32, #tpu.memory_space<vmem>>, %arg4: memref<1x1024xf32, #tpu.memory_space<vmem>>, %arg5: memref<1x2x1024xf32, #tpu.memory_space<vmem>>) attributes {dimension_semantics = [#tpu.dimension_semantics<arbitrary>, #tpu.dimension_semantics<arbitrary>], iteration_bounds = array<i64: 2, 1>, scalar_prefetch = 0 : i64, scratch_operands = 1 : i64, tpu.core_type = #tpu.core_type<tc>, window_params = [{transform_indices = @transform_0, window_bounds = array<i64: 2, 1024>}, {transform_indices = @transform_1, window_bounds = array<i64: 2, 1024>}, {pipeline_mode = #tpu.pipeline_mode<synchronous>, transform_indices = @transform_2, window_bounds = array<i64: 1, 1024>}]} {
    %c0_i32 = arith.constant 0 : i32
    %0 = arith.cmpi eq, %arg0, %c0_i32 : i32
    %1 = arith.extui %0 : i1 to i32
    %c0_i32_0 = arith.constant 0 : i32
    %2 = arith.cmpi ne, %1, %c0_i32_0 : i32
    scf.if %2 {
      %c0 = arith.constant 0 : index
      %c0_2 = arith.constant 0 : index
      %6 = vector.load %arg2[%c0, %c0_2] : memref<2x1024xf32, #tpu.memory_space<vmem>>, vector<2x1024xf32>
      %cst = arith.constant dense<0.000000e+00> : vector<2xf32>
      %7 = vector.multi_reduction <add>, %6, %cst [1] : vector<2x1024xf32> to vector<2xf32>
      %8 = vector.shape_cast %7 : vector<2xf32> to vector<2x1xf32>
      %cst_3 = arith.constant 9.765625E-4 : f32
      %9 = vector.broadcast %cst_3 : f32 to vector<2x1xf32>
      %10 = arith.mulf %8, %9 : vector<2x1xf32>
      %11 = vector.broadcast %10 : vector<2x1xf32> to vector<2x1024xf32>
      %12 = arith.subf %6, %11 : vector<2x1024xf32>
      %13 = arith.mulf %12, %12 : vector<2x1024xf32>
      %cst_4 = arith.constant dense<0.000000e+00> : vector<2xf32>
      %14 = vector.multi_reduction <add>, %13, %cst_4 [1] : vector<2x1024xf32> to vector<2xf32>
      %15 = vector.shape_cast %14 : vector<2xf32> to vector<2x1xf32>
      %cst_5 = arith.constant 9.765625E-4 : f32
      %16 = vector.broadcast %cst_5 : f32 to vector<2x1xf32>
      %17 = arith.mulf %15, %16 : vector<2x1xf32>
      %cst_6 = arith.constant 9.99999974E-6 : f32
      %18 = vector.broadcast %cst_6 : f32 to vector<2x1xf32>
      %19 = arith.addf %17, %18 : vector<2x1xf32>
      %20 = math.rsqrt %19 : vector<2x1xf32>
      %21 = vector.broadcast %20 : vector<2x1xf32> to vector<2x1024xf32>
      %22 = arith.mulf %12, %21 : vector<2x1024xf32>
      %23 = arith.index_cast %arg1 : i32 to index
      %c0_7 = arith.constant 0 : index
      %c0_8 = arith.constant 0 : index
      %24 = vector.load %arg5[%23, %c0_7, %c0_8] : memref<1x2x1024xf32, #tpu.memory_space<vmem>>, vector<1x2x1024xf32>
      %25 = vector.shape_cast %24 : vector<1x2x1024xf32> to vector<2x1024xf32>
      %26 = vector.shape_cast %22 : vector<2x1024xf32> to vector<1x2x1024xf32>
      tpu.vector_store %arg5[%23, %c0_7, %c0_8], %26 {strides = array<i32>} : memref<1x2x1024xf32, #tpu.memory_space<vmem>>, vector<1x2x1024xf32>,
      %c0_i32_9 = arith.constant 0 : i32
      %27 = arith.cmpi eq, %arg1, %c0_i32_9 : i32
      %28 = arith.extui %27 : i1 to i32
      %c0_i32_10 = arith.constant 0 : i32
      %29 = arith.cmpi ne, %28, %c0_i32_10 : i32
      scf.if %29 {
        %cst_18 = arith.constant 0.000000e+00 : f32
        %38 = vector.broadcast %cst_18 : f32 to vector<1x1024xf32>
        %c0_19 = arith.constant 0 : index
        %c0_20 = arith.constant 0 : index
        %39 = vector.load %arg4[%c0_19, %c0_20] : memref<1x1024xf32, #tpu.memory_space<vmem>>, vector<1x1024xf32>
        tpu.vector_store %arg4[%c0_19, %c0_20], %38 {strides = array<i32>} : memref<1x1024xf32, #tpu.memory_space<vmem>>, vector<1x1024xf32>,
      } else {
      }
      %c0_11 = arith.constant 0 : index
      %c0_12 = arith.constant 0 : index
      %30 = vector.load %arg4[%c0_11, %c0_12] : memref<1x1024xf32, #tpu.memory_space<vmem>>, vector<1x1024xf32>
      %cst_13 = arith.constant dense<0.000000e+00> : vector<1024xf32>
      %31 = vector.multi_reduction <add>, %22, %cst_13 [0] : vector<2x1024xf32> to vector<1024xf32>
      %32 = vector.shape_cast %31 : vector<1024xf32> to vector<1x1024xf32>
      %33 = arith.addf %30, %32 : vector<1x1024xf32>
      %c0_14 = arith.constant 0 : index
      %c0_15 = arith.constant 0 : index
      %34 = vector.load %arg4[%c0_14, %c0_15] : memref<1x1024xf32, #tpu.memory_space<vmem>>, vector<1x1024xf32>
      tpu.vector_store %arg4[%c0_14, %c0_15], %33 {strides = array<i32>} : memref<1x1024xf32, #tpu.memory_space<vmem>>, vector<1x1024xf32>,
      %c0_i32_16 = arith.constant 0 : i32
      %35 = arith.cmpi eq, %arg1, %c0_i32_16 : i32
      %36 = arith.extui %35 : i1 to i32
      %c0_i32_17 = arith.constant 0 : i32
      %37 = arith.cmpi ne, %36, %c0_i32_17 : i32
      scf.if %37 {
        %c0_18 = arith.constant 0 : index
        %c0_19 = arith.constant 0 : index
        %38 = vector.load %arg4[%c0_18, %c0_19] : memref<1x1024xf32, #tpu.memory_space<vmem>>, vector<1x1024xf32>
        %cst_20 = arith.constant 5.000000e-01 : f32
        %39 = vector.broadcast %cst_20 : f32 to vector<1x1024xf32>
        %40 = arith.mulf %38, %39 : vector<1x1024xf32>
        %c0_21 = arith.constant 0 : index
        %c0_22 = arith.constant 0 : index
        %41 = vector.load %arg4[%c0_21, %c0_22] : memref<1x1024xf32, #tpu.memory_space<vmem>>, vector<1x1024xf32>
        tpu.vector_store %arg4[%c0_21, %c0_22], %40 {strides = array<i32>} : memref<1x1024xf32, #tpu.memory_space<vmem>>, vector<1x1024xf32>,
      } else {
      }
    } else {
    }
    %c1_i32 = arith.constant 1 : i32
    %3 = arith.cmpi eq, %arg0, %c1_i32 : i32
    %4 = arith.extui %3 : i1 to i32
    %c0_i32_1 = arith.constant 0 : i32
    %5 = arith.cmpi ne, %4, %c0_i32_1 : i32
    scf.if %5 {
      %6 = arith.index_cast %arg1 : i32 to index
      %c0 = arith.constant 0 : index
      %c0_2 = arith.constant 0 : index
      %7 = vector.load %arg5[%6, %c0, %c0_2] : memref<1x2x1024xf32, #tpu.memory_space<vmem>>, vector<1x2x1024xf32>
      %8 = vector.shape_cast %7 : vector<1x2x1024xf32> to vector<2x1024xf32>
      %c0_3 = arith.constant 0 : index
      %c0_4 = arith.constant 0 : index
      %9 = vector.load %arg4[%c0_3, %c0_4] : memref<1x1024xf32, #tpu.memory_space<vmem>>, vector<1x1024xf32>
      %10 = vector.broadcast %9 : vector<1x1024xf32> to vector<2x1024xf32>
      %11 = arith.cmpf oge, %8, %10 : vector<2x1024xf32>
      %cst = arith.constant 0.000000e+00 : f32
      %12 = vector.broadcast %cst : f32 to vector<2x1024xf32>
      %13 = arith.select %11, %8, %12 : vector<2x1024xi1>, vector<2x1024xf32>
      %c0_5 = arith.constant 0 : index
      %c0_6 = arith.constant 0 : index
      %14 = vector.load %arg3[%c0_5, %c0_6] : memref<2x1024xf32, #tpu.memory_space<vmem>>, vector<2x1024xf32>
      tpu.vector_store %arg3[%c0_5, %c0_6], %13 {strides = array<i32>} : memref<2x1024xf32, #tpu.memory_space<vmem>>, vector<2x1024xf32>,
    } else {
    }
    return
  }
  func.func @transform_0(%arg0: i32, %arg1: i32) -> (i32, i32) {
    %c1_i32 = arith.constant 1 : i32
    %0 = arith.subi %c1_i32, %arg0 : i32
    %1 = arith.muli %0, %arg1 : i32
    %c0_i32 = arith.constant 0 : i32
    %2 = arith.muli %arg0, %c0_i32 : i32
    %3 = arith.addi %1, %2 : i32
    %c0_i32_0 = arith.constant 0 : i32
    %c0_i32_1 = arith.constant 0 : i32
    return %3, %c0_i32_0 : i32, i32
  }
  func.func @transform_1(%arg0: i32, %arg1: i32) -> (i32, i32) {
    %0 = arith.muli %arg0, %arg1 : i32
    %c0_i32 = arith.constant 0 : i32
    %c0_i32_0 = arith.constant 0 : i32
    return %0, %c0_i32 : i32, i32
  }
  func.func @transform_2(%arg0: i32, %arg1: i32) -> (i32, i32) {
    %c0_i32 = arith.constant 0 : i32
    %c0_i32_0 = arith.constant 0 : i32
    %c0_i32_1 = arith.constant 0 : i32
    return %c0_i32, %c0_i32_0 : i32, i32
  }
}

</mosaic_0001>

<llo_original>
// kernel: tpu_custom_call.1
$region0: #{tpu_custom_call.1}
  #allocation0 [shape = 'u32[]', space=smem, size = 0x4, offset = 0x4, fixed_abs, tag = 'smem constant byte address 0x4 - core index']
  #allocation1 [shape = 'u32[144,128]{1,0:T(1,128)}', space=vmem, size = 0x12000, scoped, tag = 'internal scratch']
  #allocation2 [shape = 'f32[1,2,1024]{2,1,0:T(2,128)}', space=vmem, size = 0x2000, scoped, tag = 'scratch operand']
  %s0 = inlined_call_operand.hbm [shape: f32[2,1024], index: 0, kind: input, shape index: {}]
  %s1 = inlined_call_operand.hbm [shape: f32[2,1024], index: 1, kind: output, shape index: {0}]
  %s2 = inlined_call_operand.hbm [shape: f32[1,1024], index: 2, kind: output, shape index: {1}]
  %3 = xla_tuple %s1, %s2
  %s4 = sld [smem:[#allocation0]]
  $region65: #{tpu_custom_call.1} parent=0
    _
  %s6 = ssub.s32 1, %s4
  %s7 = scalar_select 0, %s6, %s4
  $region1: #{tpu_custom_call.1} parent=0
    #allocation3 [shape = 'u8[16384]{0}', space=vmem, size = 0x4000, scoped, tag = 'input window, operand 0']
    #allocation4 [shape = 's32[2]{0}', space=sflag, size = 0x8, scoped, tag = 'scoped memory for tpu_custom_call.1']
    #allocation5 [shape = 's32[2]{0}', space=sflag, size = 0x8, scoped, tag = 'scoped memory for tpu_custom_call.1']
    #allocation6 [shape = 'u8[16384]{0}', space=vmem, size = 0x4000, scoped, tag = 'output window, operand 0']
    #allocation7 [shape = 'u8[4096]{0}', space=vmem, size = 0x1000, scoped, tag = 'output window, operand 1, single buffered']
    #allocation8 [shape = 's32[1]{0}', space=sflag, size = 0x4, scoped, tag = 'scoped memory for tpu_custom_call.1']
    %8 = vsyncpa [#allocation4], 0
    %s9 = scalar_lea.sflag [#allocation4], 1
    %10 = vsyncpa %s9, 0
    %11 = vsyncpa [#allocation5], 0
    %s12 = scalar_lea.sflag [#allocation5], 1
    %13 = vsyncpa %s12, 0
    %14 = vsyncpa [#allocation8], 0
    loop: start=0, step=1, limit=4
    $region2: #{tpu_custom_call.1} parent=1 // loop_pre_header
      _
    $region3: #{tpu_custom_call.1} parent=1 // loop_header
      %s16 = sphi 0, %s20
      %p17 = scmp.ge.s32.totalorder %s16, 4
      %s23 = sphi 0, %s35
      %s24 = sphi 0, %s31
      %s25 = sphi 0, %s23
      %s26 = sphi 0, %s24
      %s27 = sphi 0, %s25
      %s28 = sphi 0, %s26
      %s42 = sphi 0, %s44
      %s45 = sphi 0, %s42
      %s46 = sphi 0, %s45
      %s62 = sphi 0, %s46
      %s70 = sphi 0, %s72
      %s73 = sphi 0, %s70
      %s74 = sphi 0, %s73
      %s90 = sphi 0, %s74
      %s94 = sphi 0, %s94
      %s96 = sphi 0, %s94
      %s97 = sphi 0, %s96
      %s111 = sphi 0, %s97
    $region4: #{tpu_custom_call.1} parent=1 // loop_header_branch
      %19 = sbr.rel (%p17) target = $region8
    $region5: #{tpu_custom_call.1} parent=1 // loop_body
      %s21 = ssub.s32 %s16, 1
      %s22 = ssub.s32 %s16, 2
      %s29 = sadd.s32 1, %s24
      %p30 = scmp.ge.s32.totalorder %s29, 1
      %s31 = scalar_select %p30, 0, %s29
      %s32 = sadd.s32 1, %s23
      %s33 = scalar_select %p30, %s32, %s23
      %p34 = scmp.ge.s32.totalorder %s33, 2
      %s35 = scalar_select %p34, 0, %s33
      %s36 = ssub.s32 1, %s23
      %s37 = smul.u32 %s36, %s24
      %s38 = ssub.s32 1, %s35
      %s39 = smul.u32 %s38, %s31
      %s40 = ssub.s32 %s37, %s39
      %p41 = scmp.eq.s32.totalorder %s40, 0
      %s43 = sadd.s32 %s42, 1
      %s44 = scalar_select %p41, %s42, %s43
      %p47 = pneg %p41
      %p48 = scmp.eq.s32.totalorder %s16, 1
      %p49 = por %p47, %p48
      %p50 = scmp.ne.s32.totalorder %s42, %s45
      %p51 = scmp.eq.s32.totalorder %s16, 0
      %p52 = por %p50, %p51
      %p53 = scmp.ne.s32.totalorder %s42, %s45
      %p54 = scmp.eq.s32.totalorder %s21, 1
      %p55 = por %p53, %p54
      %p56 = scmp.ne.s32.totalorder %s45, %s46
      %p57 = scmp.eq.s32.totalorder %s21, 0
      %p58 = por %p56, %p57
      %p59 = scmp.ne.s32.totalorder %s45, %s46
      %p60 = scmp.eq.s32.totalorder %s22, 1
      %p61 = por %p59, %p60
      %p63 = scmp.ne.s32.totalorder %s46, %s62
      %p64 = scmp.eq.s32.totalorder %s22, 0
      %p65 = por %p63, %p64
      %s66 = smul.u32 %s23, %s24
      %s67 = smul.u32 %s35, %s31
      %s68 = ssub.s32 %s66, %s67
      %p69 = scmp.eq.s32.totalorder %s68, 0
      %s71 = sadd.s32 %s70, 1
      %s72 = scalar_select %p69, %s70, %s71
      %p75 = pneg %p69
      %p76 = scmp.eq.s32.totalorder %s16, 1
      %p77 = por %p75, %p76
      %p78 = scmp.ne.s32.totalorder %s70, %s73
      %p79 = scmp.eq.s32.totalorder %s16, 0
      %p80 = por %p78, %p79
      %p81 = scmp.ne.s32.totalorder %s70, %s73
      %p82 = scmp.eq.s32.totalorder %s21, 1
      %p83 = por %p81, %p82
      %p84 = scmp.ne.s32.totalorder %s73, %s74
      %p85 = scmp.eq.s32.totalorder %s21, 0
      %p86 = por %p84, %p85
      %p87 = scmp.ne.s32.totalorder %s73, %s74
      %p88 = scmp.eq.s32.totalorder %s22, 1
      %p89 = por %p87, %p88
      %p91 = scmp.ne.s32.totalorder %s74, %s90
      %p92 = scmp.eq.s32.totalorder %s22, 0
      %p93 = por %p91, %p92
      %s95 = sadd.s32 %s94, 1
      %p98 = scmp.eq.s32.totalorder %s16, 1
      %p99 = scmp.ne.s32.totalorder %s94, %s96
      %p100 = scmp.eq.s32.totalorder %s16, 0
      %p101 = por %p99, %p100
      %p102 = scmp.ne.s32.totalorder %s94, %s96
      %p103 = scmp.eq.s32.totalorder %s21, 1
      %p104 = por %p102, %p103
      %p105 = scmp.ne.s32.totalorder %s96, %s97
      %p106 = scmp.eq.s32.totalorder %s21, 0
      %p107 = por %p105, %p106
      %p108 = scmp.ne.s32.totalorder %s96, %s97
      %p109 = scmp.eq.s32.totalorder %s22, 1
      %p110 = por %p108, %p109
      %p112 = scmp.ne.s32.totalorder %s97, %s111
      %p113 = scmp.eq.s32.totalorder %s22, 0
      %p114 = por %p112, %p113
      %p115 = scmp.le.s32.totalorder 1, %s16
      %p116 = scmp.lt.s32.totalorder %s16, 3
      %p117 = pnand %p115, %p116
      %p118 = pneg %p117
      // Predicated region
      $region9: #{tpu_custom_call.1} parent=5 // pred_check
        _
      $region10: #{tpu_custom_call.1} parent=5 // pred_check_branch
        %120 = sbr.rel (%p117) target = $region12
      $region11: #{tpu_custom_call.1} parent=5 // pred_region
        %s121 = ssub.s32 %s16, 1
      $region12: #{tpu_custom_call.1} parent=5 // pred_fallthru
        _
      %p122 = scmp.lt.s32.totalorder %s16, 2
      // Predicated region
      $region13: #{tpu_custom_call.1} parent=5 // pred_check
        %p123 = pneg %p122
      $region14: #{tpu_custom_call.1} parent=5 // pred_check_branch
        %125 = sbr.rel (%p123) target = $region16
      $region15: #{tpu_custom_call.1} parent=5 // pred_region
        // Predicated region
        $region17: #{tpu_custom_call.1} parent=15 // pred_check
          %p126 = pneg %p52
        $region18: #{tpu_custom_call.1} parent=15 // pred_check_branch
          %128 = sbr.rel (%p126) target = $region20
        $region19: #{tpu_custom_call.1} parent=15 // pred_region
          %s129 = sand.u32 %s42, 1
          %s130 = scalar_lea.sflag [#allocation4], %s129
          %s131 = sand.u32 %s42, 1
          %s132 = smul.addr %s131, 16
          %s133 = scalar_lea.vmem [#allocation3], %s132
          %s134 = ssub.s32 1, %s23
          %s135 = smul.u32 %s134, %s24
          %s137 = ssub.s32 256, 256
          %138 = vsyncadd %s130, %s137
          %s139 = smul.addr %s135, 8
          %s140 = smul.addr %s139, 32
          %s141 = scalar_lea.hbm %s0, %s140
          %s143 = sshll.u32 %s133, 4
          %s144 = int_to_ptr.vmem [resolvable:$true] %s143
          %146 = dma.hbm_to_vmem [thread:$0]  %s141, 256, %s144, %s130
        $region20: #{tpu_custom_call.1} parent=15 // pred_fallthru
          _
      $region16: #{tpu_custom_call.1} parent=5 // pred_fallthru
        _
      %p147 = scmp.le.s32.totalorder 1, %s16
      %p148 = scmp.lt.s32.totalorder %s16, 3
      %p149 = pnand %p147, %p148
      %p150 = pneg %p149
      // Predicated region
      $region21: #{tpu_custom_call.1} parent=5 // pred_check
        _
      $region22: #{tpu_custom_call.1} parent=5 // pred_check_branch
        %152 = sbr.rel (%p149) target = $region24
      $region23: #{tpu_custom_call.1} parent=5 // pred_region
        %s153 = ssub.s32 %s16, 1
        %s154 = sand.u32 %s45, 1
        %s155 = scalar_lea.sflag [#allocation4], %s154
        %s156 = sand.u32 %s45, 1
        %s157 = smul.addr %s156, 16
        %s158 = scalar_lea.vmem [#allocation3], %s157
        // Predicated region
        $region25: #{tpu_custom_call.1} parent=23 // pred_check
          %p159 = pneg %p58
        $region26: #{tpu_custom_call.1} parent=23 // pred_check_branch
          %161 = sbr.rel (%p159) target = $region28
        $region27: #{tpu_custom_call.1} parent=23 // pred_region
          %162 = dma.done %s155, 256
        $region28: #{tpu_custom_call.1} parent=23 // pred_fallthru
          _
        %s163 = sand.u32 %s45, 1
        %s164 = scalar_lea.sflag [#allocation4], %s163
        %s165 = sand.u32 %s45, 1
        %s166 = smul.addr %s165, 16
        %s167 = scalar_lea.vmem [#allocation3], %s166
        %p168 = pneg %p58
        %p169 = pneg %p55
        %p170 = pneg %p86
        %p171 = pneg %p83
        %s172 = sand.u32 %s73, 1
        %s173 = scalar_lea.sflag [#allocation5], %s172
        %s174 = sand.u32 %s73, 1
        %s175 = smul.addr %s174, 16
        %s176 = scalar_lea.vmem [#allocation6], %s175
        %p177 = pneg %p107
        %p178 = pneg %p104
        %s179 = ssub.s32 1, %s25
        %s180 = smul.u32 %s179, %s26
        %s181 = smul.u32 %s25, %s26
        %p182 = scmp.eq.s32.totalorder %s25, 0
        // Predicated region
        $region29: #{tpu_custom_call.1} parent=23 // pred_check
          %p183 = pneg %p182
        $region30: #{tpu_custom_call.1} parent=23 // pred_check_branch
          %185 = sbr.rel (%p183) target = $region32
        $region31: #{tpu_custom_call.1} parent=23 // pred_region
          %v186 = vld [vmem:[%s158] sm:$0xff]
          %v187 = vld [vmem:[%s158 + $0x8] sm:$0xff]
          %v190 = vcombine.high %v186, %v186
          %v192 = vunpack.c.l.s4 1983009808
          %v193 = vunpack.c.0.s8 %v192
          %v194 = vlaneseq
          %v195 = vshrl.u32 %v194, 7
          %v196 = vsub.s32 %v193, %v195
          %v197 = vrot.slane %v186, %v196
          %v199 = vunpack.c.l.s4 1983009808
          %v200 = vunpack.c.0.s8 %v199
          %v201 = vlaneseq
          %v202 = vshrl.u32 %v201, 7
          %v203 = vsub.s32 %v200, %v202
          %v204 = vrot.slane %v190, %v203
          %v205 = vcombine.high %v197, %v197
          %v206 = vcombine.high %v204, %v204
          %v207 = vcombine.high %v187, %v187
          %v209 = vunpack.c.l.s4 1983009808
          %v210 = vunpack.c.0.s8 %v209
          %v211 = vlaneseq
          %v212 = vshrl.u32 %v211, 7
          %v213 = vsub.s32 %v210, %v212
          %v214 = vrot.slane %v187, %v213
          %v216 = vunpack.c.l.s4 1983009808
          %v217 = vunpack.c.0.s8 %v216
          %v218 = vlaneseq
          %v219 = vshrl.u32 %v218, 7
          %v220 = vsub.s32 %v217, %v219
          %v221 = vrot.slane %v207, %v220
          %v222 = vcombine.high %v214, %v214
          %v223 = vcombine.high %v221, %v221
          %vm232 = vcmask 1041408
          %v233 = vsel %vm232, %v197, 0.0
          %v234 = vsel %vm232, %v205, 0.0
          %v235 = vadd.f32 %v233, %v234
          %v236 = vsel %vm232, %v204, 0.0
          %v237 = vadd.f32 %v235, %v236
          %v238 = vsel %vm232, %v206, 0.0
          %v239 = vadd.f32 %v237, %v238
          %v240 = vsel %vm232, %v214, 0.0
          %v241 = vadd.f32 %v239, %v240
          %v242 = vsel %vm232, %v222, 0.0
          %v243 = vadd.f32 %v241, %v242
          %v244 = vsel %vm232, %v221, 0.0
          %v245 = vadd.f32 %v243, %v244
          %v246 = vsel %vm232, %v223, 0.0
          %v247 = vadd.f32 %v245, %v246
          %248 = vadd.xlane.f32.xlu0 %v247
          %v249 = vpop.xlane.xlu0 %248
          %v250 = vmul.f32 %v249, 0.0009765625
          %v253 = vunpack.c.l.s4 269488144
          %v254 = vunpack.c.0.s8 %v253
          %v255 = vlaneseq
          %v256 = vshrl.u32 %v255, 7
          %v257 = vsub.s32 %v254, %v256
          %v258 = vrot.slane %v250, %v257
          %v260 = vsub.f32 %v186, %v258
          %v261 = vsub.f32 %v187, %v258
          %v262 = vmul.f32 %v260, %v260
          %v263 = vmul.f32 %v261, %v261
          %v266 = vcombine.high %v262, %v262
          %v268 = vunpack.c.l.s4 1983009808
          %v269 = vunpack.c.0.s8 %v268
          %v270 = vlaneseq
          %v271 = vshrl.u32 %v270, 7
          %v272 = vsub.s32 %v269, %v271
          %v273 = vrot.slane %v262, %v272
          %v275 = vunpack.c.l.s4 1983009808
          %v276 = vunpack.c.0.s8 %v275
          %v277 = vlaneseq
          %v278 = vshrl.u32 %v277, 7
          %v279 = vsub.s32 %v276, %v278
          %v280 = vrot.slane %v266, %v279
          %v281 = vcombine.high %v273, %v273
          %v282 = vcombine.high %v280, %v280
          %v283 = vcombine.high %v263, %v263
          %v285 = vunpack.c.l.s4 1983009808
          %v286 = vunpack.c.0.s8 %v285
          %v287 = vlaneseq
          %v288 = vshrl.u32 %v287, 7
          %v289 = vsub.s32 %v286, %v288
          %v290 = vrot.slane %v263, %v289
          %v292 = vunpack.c.l.s4 1983009808
          %v293 = vunpack.c.0.s8 %v292
          %v294 = vlaneseq
          %v295 = vshrl.u32 %v294, 7
          %v296 = vsub.s32 %v293, %v295
          %v297 = vrot.slane %v283, %v296
          %v298 = vcombine.high %v290, %v290
          %v299 = vcombine.high %v297, %v297
          %v308 = vsel %vm232, %v273, 0.0
          %v309 = vsel %vm232, %v281, 0.0
          %v310 = vadd.f32 %v308, %v309
          %v311 = vsel %vm232, %v280, 0.0
          %v312 = vadd.f32 %v310, %v311
          %v313 = vsel %vm232, %v282, 0.0
          %v314 = vadd.f32 %v312, %v313
          %v315 = vsel %vm232, %v290, 0.0
          %v316 = vadd.f32 %v314, %v315
          %v317 = vsel %vm232, %v298, 0.0
          %v318 = vadd.f32 %v316, %v317
          %v319 = vsel %vm232, %v297, 0.0
          %v320 = vadd.f32 %v318, %v319
          %v321 = vsel %vm232, %v299, 0.0
          %v322 = vadd.f32 %v320, %v321
          %323 = vadd.xlane.f32.xlu0 %v322
          %v324 = vpop.xlane.xlu0 %323
          %v325 = vmul.f32 %v324, 0.0009765625
          %v326 = vadd.f32 %v325, 1e-05
          %v327 = vrsqrt.pop %v326
          %v330 = vunpack.c.l.s4 269488144
          %v331 = vunpack.c.0.s8 %v330
          %v332 = vlaneseq
          %v333 = vshrl.u32 %v332, 7
          %v334 = vsub.s32 %v331, %v333
          %v335 = vrot.slane %v327, %v334
          %v337 = vmul.f32 %v260, %v335
          %v338 = vmul.f32 %v261, %v335
          %s339 = smul.u32 %s26, 8
          %s340 = smul.addr %s339, 2
          %s341 = scalar_lea.vmem [#allocation2], %s340
          %342 = vst [vmem:[%s341] sm:$0xff] %v337
          %343 = vst [vmem:[%s341 + $0x8] sm:$0xff] %v338
          %p344 = scmp.eq.s32.totalorder %s26, 0
          // Predicated region
          $region33: #{tpu_custom_call.1} parent=31 // pred_check
            %p345 = pneg %p344
          $region34: #{tpu_custom_call.1} parent=31 // pred_check_branch
            %347 = sbr.rel (%p345) target = $region36
          $region35: #{tpu_custom_call.1} parent=31 // pred_region
            %348 = vst [vmem:[#allocation7] sm:$0xff] 0.0
          $region36: #{tpu_custom_call.1} parent=31 // pred_fallthru
            _
          %v349 = vld [vmem:[#allocation7] sm:$0xff]
          %v352 = vcombine.high %v337, %v337
          %v354 = vunpack.c.l.s4 1983009808
          %v355 = vunpack.c.0.s8 %v354
          %v356 = vlaneseq
          %v357 = vshrl.u32 %v356, 7
          %v358 = vsub.s32 %v355, %v357
          %v359 = vrot.slane %v337, %v358
          %v361 = vunpack.c.l.s4 1983009808
          %v362 = vunpack.c.0.s8 %v361
          %v363 = vlaneseq
          %v364 = vshrl.u32 %v363, 7
          %v365 = vsub.s32 %v362, %v364
          %v366 = vrot.slane %v352, %v365
          %v367 = vcombine.high %v359, %v359
          %v368 = vcombine.high %v366, %v366
          %v369 = vcombine.high %v338, %v338
          %v371 = vunpack.c.l.s4 1983009808
          %v372 = vunpack.c.0.s8 %v371
          %v373 = vlaneseq
          %v374 = vshrl.u32 %v373, 7
          %v375 = vsub.s32 %v372, %v374
          %v376 = vrot.slane %v338, %v375
          %v378 = vunpack.c.l.s4 1983009808
          %v379 = vunpack.c.0.s8 %v378
          %v380 = vlaneseq
          %v381 = vshrl.u32 %v380, 7
          %v382 = vsub.s32 %v379, %v381
          %v383 = vrot.slane %v369, %v382
          %v384 = vcombine.high %v376, %v376
          %v385 = vcombine.high %v383, %v383
          %v394 = vsel %vm232, %v359, 0.0
          %v395 = vrot.slane %v394, 4
          %v396 = vadd.f32 %v394, %v395
          %v397 = vrot.slane %v396, 2
          %v398 = vadd.f32 %v396, %v397
          %v399 = vrot.slane %v398, 1
          %v400 = vadd.f32 %v398, %v399
          %v401 = vsel %vm232, %v367, 0.0
          %v402 = vrot.slane %v401, 4
          %v403 = vadd.f32 %v401, %v402
          %v404 = vrot.slane %v403, 2
          %v405 = vadd.f32 %v403, %v404
          %v406 = vrot.slane %v405, 1
          %v407 = vadd.f32 %v405, %v406
          %v408 = vsel %vm232, %v366, 0.0
          %v409 = vrot.slane %v408, 4
          %v410 = vadd.f32 %v408, %v409
          %v411 = vrot.slane %v410, 2
          %v412 = vadd.f32 %v410, %v411
          %v413 = vrot.slane %v412, 1
          %v414 = vadd.f32 %v412, %v413
          %v415 = vsel %vm232, %v368, 0.0
          %v416 = vrot.slane %v415, 4
          %v417 = vadd.f32 %v415, %v416
          %v418 = vrot.slane %v417, 2
          %v419 = vadd.f32 %v417, %v418
          %v420 = vrot.slane %v419, 1
          %v421 = vadd.f32 %v419, %v420
          %v422 = vsel %vm232, %v376, 0.0
          %v423 = vrot.slane %v422, 4
          %v424 = vadd.f32 %v422, %v423
          %v425 = vrot.slane %v424, 2
          %v426 = vadd.f32 %v424, %v425
          %v427 = vrot.slane %v426, 1
          %v428 = vadd.f32 %v426, %v427
          %v429 = vsel %vm232, %v384, 0.0
          %v430 = vrot.slane %v429, 4
          %v431 = vadd.f32 %v429, %v430
          %v432 = vrot.slane %v431, 2
          %v433 = vadd.f32 %v431, %v432
          %v434 = vrot.slane %v433, 1
          %v435 = vadd.f32 %v433, %v434
          %v436 = vsel %vm232, %v383, 0.0
          %v437 = vrot.slane %v436, 4
          %v438 = vadd.f32 %v436, %v437
          %v439 = vrot.slane %v438, 2
          %v440 = vadd.f32 %v438, %v439
          %v441 = vrot.slane %v440, 1
          %v442 = vadd.f32 %v440, %v441
          %v443 = vsel %vm232, %v385, 0.0
          %v444 = vrot.slane %v443, 4
          %v445 = vadd.f32 %v443, %v444
          %v446 = vrot.slane %v445, 2
          %v447 = vadd.f32 %v445, %v446
          %v448 = vrot.slane %v447, 1
          %v449 = vadd.f32 %v447, %v448
          %v458 = vcombine.low %v400, %v407
          %v459 = vcombine.low %v414, %v421
          %v460 = vcombine.low %v428, %v435
          %v461 = vcombine.low %v442, %v449
          %v463 = vunpack.c.l.s4 1966171168
          %v464 = vunpack.c.0.s8 %v463
          %v465 = vlaneseq
          %v466 = vshrl.u32 %v465, 7
          %v467 = vsub.s32 %v464, %v466
          %v468 = vrot.slane %v458, %v467
          %v470 = vunpack.c.l.s4 1966171168
          %v471 = vunpack.c.0.s8 %v470
          %v472 = vlaneseq
          %v473 = vshrl.u32 %v472, 7
          %v474 = vsub.s32 %v471, %v473
          %v475 = vrot.slane %v459, %v474
          %v477 = vunpack.c.l.s4 1966171168
          %v478 = vunpack.c.0.s8 %v477
          %v479 = vlaneseq
          %v480 = vshrl.u32 %v479, 7
          %v481 = vsub.s32 %v478, %v480
          %v482 = vrot.slane %v460, %v481
          %v484 = vunpack.c.l.s4 1966171168
          %v485 = vunpack.c.0.s8 %v484
          %v486 = vlaneseq
          %v487 = vshrl.u32 %v486, 7
          %v488 = vsub.s32 %v485, %v487
          %v489 = vrot.slane %v461, %v488
          %v490 = vcombine.low %v468, %v475
          %v491 = vcombine.low %v482, %v489
          %v493 = vunpack.c.l.s4 1966171168
          %v494 = vunpack.c.0.s8 %v493
          %v495 = vlaneseq
          %v496 = vshrl.u32 %v495, 7
          %v497 = vsub.s32 %v494, %v496
          %v498 = vrot.slane %v490, %v497
          %v500 = vunpack.c.l.s4 1966171168
          %v501 = vunpack.c.0.s8 %v500
          %v502 = vlaneseq
          %v503 = vshrl.u32 %v502, 7
          %v504 = vsub.s32 %v501, %v503
          %v505 = vrot.slane %v491, %v504
          %v506 = vcombine.low %v498, %v505
          %v508 = vadd.f32 %v349, %v506
          %509 = vst [vmem:[#allocation7] sm:$0xff] %v508
          // Predicated region
          $region37: #{tpu_custom_call.1} parent=31 // pred_check
            %p510 = pneg %p344
          $region38: #{tpu_custom_call.1} parent=31 // pred_check_branch
            %512 = sbr.rel (%p510) target = $region40
          $region39: #{tpu_custom_call.1} parent=31 // pred_region
            %v513 = vld [vmem:[#allocation7] sm:$0xff]
            %v514 = vmul.f32 %v513, 0.5
            %515 = vst [vmem:[#allocation7] sm:$0xff] %v514
          $region40: #{tpu_custom_call.1} parent=31 // pred_fallthru
            _
        $region32: #{tpu_custom_call.1} parent=23 // pred_fallthru
          _
        %p516 = scmp.eq.s32.totalorder %s25, 1
        // Predicated region
        $region41: #{tpu_custom_call.1} parent=23 // pred_check
          %p517 = pneg %p516
        $region42: #{tpu_custom_call.1} parent=23 // pred_check_branch
          %519 = sbr.rel (%p517) target = $region44
        $region43: #{tpu_custom_call.1} parent=23 // pred_region
          %s520 = smul.u32 %s26, 8
          %s521 = smul.addr %s520, 2
          %s522 = scalar_lea.vmem [#allocation2], %s521
          %v523 = vld [vmem:[%s522] sm:$0xff]
          %v524 = vld [vmem:[%s522 + $0x8] sm:$0xff]
          %v525 = vld [vmem:[#allocation7] sm:$0xff]
          %v527 = vlaneseq
          %v528 = vshrl.u32 %v527, 7
          %v529 = vsub.s32 0, %v528
          %v530 = vrot.slane %v525, %v529
          %v531 = vlaneseq
          %v532 = vshrl.u32 %v531, 7
          %v533 = vsub.s32 1, %v532
          %v534 = vrot.slane %v525, %v533
          %v535 = vlaneseq
          %v536 = vshrl.u32 %v535, 7
          %v537 = vsub.s32 2, %v536
          %v538 = vrot.slane %v525, %v537
          %v539 = vlaneseq
          %v540 = vshrl.u32 %v539, 7
          %v541 = vsub.s32 3, %v540
          %v542 = vrot.slane %v525, %v541
          %v543 = vlaneseq
          %v544 = vshrl.u32 %v543, 7
          %v545 = vsub.s32 4, %v544
          %v546 = vrot.slane %v525, %v545
          %v547 = vlaneseq
          %v548 = vshrl.u32 %v547, 7
          %v549 = vsub.s32 5, %v548
          %v550 = vrot.slane %v525, %v549
          %v551 = vlaneseq
          %v552 = vshrl.u32 %v551, 7
          %v553 = vsub.s32 6, %v552
          %v554 = vrot.slane %v525, %v553
          %v555 = vlaneseq
          %v556 = vshrl.u32 %v555, 7
          %v557 = vsub.s32 7, %v556
          %v558 = vrot.slane %v525, %v557
          %v559 = vcombine.low %v530, %v534
          %v560 = vcombine.low %v538, %v542
          %v562 = vunpack.c.l.s4 1983009808
          %v563 = vunpack.c.0.s8 %v562
          %v564 = vlaneseq
          %v565 = vshrl.u32 %v564, 7
          %v566 = vsub.s32 %v563, %v565
          %v567 = vrot.slane %v559, %v566
          %v569 = vunpack.c.l.s4 1983009808
          %v570 = vunpack.c.0.s8 %v569
          %v571 = vlaneseq
          %v572 = vshrl.u32 %v571, 7
          %v573 = vsub.s32 %v570, %v572
          %v574 = vrot.slane %v560, %v573
          %v575 = vcombine.low %v567, %v574
          %v576 = vcombine.low %v546, %v550
          %v577 = vcombine.low %v554, %v558
          %v579 = vunpack.c.l.s4 1983009808
          %v580 = vunpack.c.0.s8 %v579
          %v581 = vlaneseq
          %v582 = vshrl.u32 %v581, 7
          %v583 = vsub.s32 %v580, %v582
          %v584 = vrot.slane %v576, %v583
          %v586 = vunpack.c.l.s4 1983009808
          %v587 = vunpack.c.0.s8 %v586
          %v588 = vlaneseq
          %v589 = vshrl.u32 %v588, 7
          %v590 = vsub.s32 %v587, %v589
          %v591 = vrot.slane %v577, %v590
          %v592 = vcombine.low %v584, %v591
          %vm595 = vcmp.ge.f32.partialorder %v523, %v575
          %vm596 = vcmp.ge.f32.partialorder %v524, %v592
          %v597 = vsel %vm595, %v523, 0.0
          %v598 = vsel %vm596, %v524, 0.0
          %599 = vst [vmem:[%s176] sm:$0xff] %v597
          %600 = vst [vmem:[%s176 + $0x8] sm:$0xff] %v598
        $region44: #{tpu_custom_call.1} parent=23 // pred_fallthru
          _
        %s601 = sand.u32 %s73, 1
        %s602 = scalar_lea.sflag [#allocation5], %s601
        %s603 = sand.u32 %s73, 1
        %s604 = smul.addr %s603, 16
        %s605 = scalar_lea.vmem [#allocation6], %s604
        // Predicated region
        $region45: #{tpu_custom_call.1} parent=23 // pred_check
          %p606 = pneg %p83
        $region46: #{tpu_custom_call.1} parent=23 // pred_check_branch
          %608 = sbr.rel (%p606) target = $region48
        $region47: #{tpu_custom_call.1} parent=23 // pred_region
          %s609 = smul.u32 %s25, %s26
          %s611 = ssub.s32 256, 256
          %612 = vsyncadd %s602, %s611
          %s613 = smul.addr %s609, 8
          %s614 = smul.addr %s613, 32
          %s615 = scalar_lea.hbm %s1, %s614
          %s617 = sshll.u32 %s605, 4
          %s618 = int_to_ptr.vmem [resolvable:$true] %s617
          %620 = dma.vmem_to_hbm [thread:$0]  %s618, 256, %s615, %s602
        $region48: #{tpu_custom_call.1} parent=23 // pred_fallthru
          _
        // Predicated region
        $region49: #{tpu_custom_call.1} parent=23 // pred_check
          %p621 = pneg %p104
        $region50: #{tpu_custom_call.1} parent=23 // pred_check_branch
          %623 = sbr.rel (%p621) target = $region52
        $region51: #{tpu_custom_call.1} parent=23 // pred_region
          %s625 = ssub.s32 128, 128
          %626 = vsyncadd [#allocation8], %s625
          %s628 = sshll.u32 [#allocation7], 4
          %s629 = int_to_ptr.vmem [resolvable:$true] %s628
          %631 = dma.vmem_to_hbm [thread:$0]  %s629, 128, %s2, [#allocation8]
        $region52: #{tpu_custom_call.1} parent=23 // pred_fallthru
          _
        // Predicated region
        $region53: #{tpu_custom_call.1} parent=23 // pred_check
          %p632 = pneg %p104
        $region54: #{tpu_custom_call.1} parent=23 // pred_check_branch
          %634 = sbr.rel (%p632) target = $region56
        $region55: #{tpu_custom_call.1} parent=23 // pred_region
          %635 = dma.done [#allocation8], 128
        $region56: #{tpu_custom_call.1} parent=23 // pred_fallthru
          _
      $region24: #{tpu_custom_call.1} parent=5 // pred_fallthru
        _
      %p636 = scmp.le.s32.totalorder 2, %s16
      // Predicated region
      $region57: #{tpu_custom_call.1} parent=5 // pred_check
        %p637 = pneg %p636
      $region58: #{tpu_custom_call.1} parent=5 // pred_check_branch
        %639 = sbr.rel (%p637) target = $region60
      $region59: #{tpu_custom_call.1} parent=5 // pred_region
        %s640 = ssub.s32 %s16, 2
        // Predicated region
        $region61: #{tpu_custom_call.1} parent=59 // pred_check
          %p641 = pneg %p89
        $region62: #{tpu_custom_call.1} parent=59 // pred_check_branch
          %643 = sbr.rel (%p641) target = $region64
        $region63: #{tpu_custom_call.1} parent=59 // pred_region
          %s644 = sand.u32 %s74, 1
          %s645 = scalar_lea.sflag [#allocation5], %s644
          %s646 = sand.u32 %s74, 1
          %s647 = smul.addr %s646, 16
          %s648 = scalar_lea.vmem [#allocation6], %s647
          %649 = dma.done %s645, 256
        $region64: #{tpu_custom_call.1} parent=59 // pred_fallthru
          _
      $region60: #{tpu_custom_call.1} parent=5 // pred_fallthru
        _
    $region6: #{tpu_custom_call.1} parent=1 // loop_footer
      %s20 = sadd.s32 1, %s16
    $region7: #{tpu_custom_call.1} parent=1 // loop_footer_branch
      %15 = sbr.rel target = $region3
    $region8: #{tpu_custom_call.1} parent=1 // loop_exit
      _
    %650 = vsyncpa [#allocation4], 1
    %s651 = scalar_lea.sflag [#allocation4], 1
    %652 = vsyncpa %s651, 1
    %653 = vsyncpa [#allocation5], 1
    %s654 = scalar_lea.sflag [#allocation5], 1
    %655 = vsyncpa %s654, 1
    %656 = vsyncpa [#allocation8], 1

</llo_original>
